<compile_context>
chip_gen: v6e
topology: v6e:2x2x1
jax: 0.10.0
libtpu: 0.0.40
codegen_flags: <defaults>
</compile_context>

<pallas_src>
import functools

import jax
import jax.numpy as jnp
import numpy as np
from jax import lax
from jax.experimental import pallas as pl
from jax.experimental.pallas import tpu as pltpu

EPS = 1e-5


def _shift_lanes(a, s):
    """out[:, p] = a[:, p + s] (static s), zero-filled past the ends of the lane axis."""
    if s == 0:
        return a
    zeros = jnp.zeros((a.shape[0], abs(s)), a.dtype)
    if s > 0:
        return jnp.concatenate([a[:, s:], zeros], axis=1)
    return jnp.concatenate([zeros, a[:, :s]], axis=1)


def _conv3x3_kernel(x_ref, gamma_ref, beta_ref, w_ref, b_ref, hh_ref, ww_ref,
                    o_ref, *, h_img, w_img, fuse_bn_relu):
    # x_ref:     (Cin, L)        f32, L = N*H*W (lane-dense)
    # gamma_ref: (Cin, 1)        f32   (unused when fuse_bn_relu=False)
    # beta_ref:  (Cin, 1)        f32   (unused when fuse_bn_relu=False)
    # w_ref:     (Cout, 9*Cin)   bf16  row layout: (ky*3 + kx)*Cin + ci
    # b_ref:     (Cout, 1)       f32
    # hh_ref:    (1, L)          int32 per-pixel h coordinate along the lane axis
    # ww_ref:    (1, L)          int32 per-pixel w coordinate along the lane axis
    # o_ref:     (Cout, L)       f32 (lane-dense output)
    x = x_ref[...]
    _, L = x.shape

    if fuse_bn_relu:
        # --- BatchNorm2d (train-mode batch stats), single pass: sum & sum-of-squares ---
        inv_l = 1.0 / float(L)
        s1 = jnp.sum(x, axis=1, keepdims=True)            # (Cin, 1)
        s2 = jnp.sum(x * x, axis=1, keepdims=True)        # (Cin, 1)
        mean = s1 * inv_l
        var = jnp.maximum(s2 * inv_l - mean * mean, 0.0)
        scale = gamma_ref[...] * lax.rsqrt(var + EPS)      # (Cin, 1)
        offset = beta_ref[...] - mean * scale              # (Cin, 1)
        # --- affine + ReLU, cast to bf16 for the MXU ---
        y = jnp.maximum(x * scale + offset, 0.0).astype(jnp.bfloat16)   # (Cin, L)
    else:
        y = x.astype(jnp.bfloat16)

    hh = hh_ref[...]                                       # (1, L)
    ww = ww_ref[...]                                       # (1, L)

    # --- 3x3 conv, padding=1: 9 in-register lane shifts + border masks (no pad scratch),
    #     fused into a single im2col matmul. ---
    taps = []
    for dy in (-1, 0, 1):
        for dx in (-1, 0, 1):
            s = dy * w_img + dx
            tap = _shift_lanes(y, s)                       # (Cin, L): y at pixel (h+dy, w+dx)
            valid = ((hh + dy >= 0) & (hh + dy < h_img) &
                     (ww + dx >= 0) & (ww + dx < w_img))
            taps.append(jnp.where(valid, tap, jnp.zeros_like(tap)))
    patches = jnp.concatenate(taps, axis=0)                # (9*Cin, L) bf16

    out = jnp.dot(w_ref[...], patches, preferred_element_type=jnp.float32)  # (Cout, L)
    o_ref[...] = out + b_ref[...]


def _conv1x1_kernel(x_ref, w_ref, b_ref, o_ref):
    # x_ref: (Cin, L) f32, w_ref: (Cout, Cin) bf16, b_ref: (Cout, 1) f32, o_ref: (Cout, L) f32
    out = jnp.dot(w_ref[...], x_ref[...].astype(jnp.bfloat16),
                  preferred_element_type=jnp.float32)
    o_ref[...] = out + b_ref[...]


# ----------------------------- wrappers ------------------------------------


def _to_channel_major(x_nchw):
    N, C, H, W = x_nchw.shape
    return jnp.transpose(x_nchw.astype(jnp.float32), (1, 0, 2, 3)).reshape(C, N * H * W)


def _from_channel_major(x_cl, N, H, W):
    C = x_cl.shape[0]
    return jnp.transpose(x_cl.reshape(C, N, H, W), (1, 0, 2, 3))


def _pixel_coords(N, H, W):
    p = np.arange(N * H * W)
    hh = jnp.asarray(((p // W) % H).astype(np.int32).reshape(1, -1))
    ww = jnp.asarray((p % W).astype(np.int32).reshape(1, -1))
    return hh, ww


def _conv3x3_forward(x_nchw, w_oihw, bias, gamma, beta, fuse_bn_relu):
    """(N,Cin,H,W) f32 -> (N,Cout,H,W) f32; optional fused train-mode BN + ReLU before conv."""
    N, Cin, H, W = x_nchw.shape
    Cout = w_oihw.shape[0]
    L = N * H * W

    x_cl = _to_channel_major(x_nchw)
    # OIHW -> (Cout, ky, kx, Cin) -> (Cout, 9*Cin), bf16 weights for the MXU
    w2 = jnp.transpose(w_oihw.astype(jnp.float32), (0, 2, 3, 1)) \
            .reshape(Cout, 9 * Cin).astype(jnp.bfloat16)
    gamma2 = gamma.reshape(Cin, 1).astype(jnp.float32)
    beta2 = beta.reshape(Cin, 1).astype(jnp.float32)
    bias2 = bias.reshape(Cout, 1).astype(jnp.float32)
    hh, ww = _pixel_coords(N, H, W)

    kernel = functools.partial(_conv3x3_kernel, h_img=H, w_img=W,
                               fuse_bn_relu=fuse_bn_relu)
    vmem = pl.BlockSpec(memory_space=pltpu.MemorySpace.VMEM)

    out_cl = pl.pallas_call(
        kernel,
        out_shape=jax.ShapeDtypeStruct((Cout, L), jnp.float32),
        in_specs=[vmem] * 7,
        out_specs=vmem,
    )(x_cl, gamma2, beta2, w2, bias2, hh, ww)

    return _from_channel_major(out_cl, N, H, W)


def first_conv_forward(x_nchw, w_oihw, bias):
    """FCDenseNet.firstconv: Conv2d(in, out, k=3, s=1, p=1, bias=True)."""
    Cin = x_nchw.shape[1]
    return _conv3x3_forward(x_nchw, w_oihw, bias,
                            gamma=jnp.ones((Cin,), jnp.float32),
                            beta=jnp.zeros((Cin,), jnp.float32),
                            fuse_bn_relu=False)


def dense_layer_forward(x_nchw, gamma, beta, w_oihw, bias):
    """Core dense-layer building block: BatchNorm2d -> ReLU -> Conv2d 3x3 pad 1."""
    return _conv3x3_forward(x_nchw, w_oihw, bias, gamma=gamma, beta=beta,
                            fuse_bn_relu=True)


def final_conv_forward(x_nchw, w_oi11, bias):
    """FCDenseNet.finalConv: Conv2d(cur_channels, n_classes, k=1, s=1, p=0, bias=True)."""
    N, Cin, H, W = x_nchw.shape
    Cout = w_oi11.shape[0]
    L = N * H * W

    x_cl = _to_channel_major(x_nchw)
    w2 = w_oi11.reshape(Cout, Cin).astype(jnp.bfloat16)
    bias2 = bias.reshape(Cout, 1).astype(jnp.float32)
    vmem = pl.BlockSpec(memory_space=pltpu.MemorySpace.VMEM)

    out_cl = pl.pallas_call(
        _conv1x1_kernel,
        out_shape=jax.ShapeDtypeStruct((Cout, L), jnp.float32),
        in_specs=[vmem] * 3,
        out_specs=vmem,
    )(x_cl, w2, bias2)

    return _from_channel_major(out_cl, N, H, W)


# ----------------------------- references ----------------------------------


def _conv_ref(x, w, b, pad):
    out = lax.conv_general_dilated(
        x, w, window_strides=(1, 1), padding=((pad, pad), (pad, pad)),
        dimension_numbers=("NCHW", "OIHW", "NCHW"))
    return out + b.reshape(1, -1, 1, 1)


def _bn_relu_ref(x, gamma, beta):
    mean = jnp.mean(x, axis=(0, 2, 3), keepdims=True)
    var = jnp.mean((x - mean) ** 2, axis=(0, 2, 3), keepdims=True)
    y = (x - mean) * lax.rsqrt(var + EPS)
    y = y * gamma.reshape(1, -1, 1, 1) + beta.reshape(1, -1, 1, 1)
    return jnp.maximum(y, 0.0)


if __name__ == "__main__":
    # Small shapes consistent with the module structure (in_channels=3, a first conv,
    # a growth-rate-sized dense layer, a 1x1 classifier conv), scaled down.
    N, H, W = 2, 16, 16
    in_ch = 3          # FCDenseNet default in_channels
    first_ch = 8       # small stand-in for out_chans_first_conv=48
    growth = 4         # small stand-in for growth_rate=16
    n_classes = 3      # small stand-in for n_classes=12

    key = jax.random.PRNGKey(0)
    kx, k1w, k1b, k2w, k2b, k3w, k3b = jax.random.split(key, 7)

    x = jax.random.normal(kx, (N, in_ch, H, W), dtype=jnp.float32)

    def conv_init(kw, kb, cout, cin, k):
        fan_in = cin * k * k
        bound = 1.0 / np.sqrt(fan_in)
        w = jax.random.uniform(kw, (cout, cin, k, k), jnp.float32, -bound, bound)
        b = jax.random.uniform(kb, (cout,), jnp.float32, -bound, bound)
        return w, b

    w1, b1 = conv_init(k1w, k1b, first_ch, in_ch, 3)
    gamma = jnp.ones((first_ch,), jnp.float32)   # BN weight default
    beta = jnp.zeros((first_ch,), jnp.float32)   # BN bias default
    w2, b2 = conv_init(k2w, k2b, growth, first_ch, 3)
    w3, b3 = conv_init(k3w, k3b, n_classes, first_ch + growth, 1)

    # firstconv
    out1 = jax.block_until_ready(first_conv_forward(x, w1, b1))
    ref1 = _conv_ref(x, w1, b1, pad=1)
    assert out1.shape == (N, first_ch, H, W)
    assert np.allclose(np.asarray(out1), np.asarray(ref1), rtol=2e-2, atol=2e-2)

    # one dense-layer of the first DenseBlock: BN -> ReLU -> Conv3x3 (fused kernel)
    out2 = jax.block_until_ready(dense_layer_forward(out1, gamma, beta, w2, b2))
    ref2 = _conv_ref(_bn_relu_ref(out1, gamma, beta), w2, b2, pad=1)
    assert out2.shape == (N, growth, H, W)
    assert np.allclose(np.asarray(out2), np.asarray(ref2), rtol=2e-2, atol=2e-2)

    # dense concatenation (pure memory op, done in the wrapper) + finalConv 1x1
    feats = jnp.concatenate([out1, out2], axis=1)
    out3 = jax.block_until_ready(final_conv_forward(feats, w3, b3))
    ref3 = _conv_ref(feats, w3, b3, pad=0)
    assert out3.shape == (N, n_classes, H, W)
    assert np.allclose(np.asarray(out3), np.asarray(ref3), rtol=2e-2, atol=2e-2)

    print("KERNEL_OK")
</pallas_src>

<mosaic_0001>
module attributes {stable_mosaic.version = 11 : i64} {
  func.func @_conv3x3_kernel(%arg0: memref<3x512xf32, #tpu.memory_space<vmem>>, %arg1: memref<3x1xf32, #tpu.memory_space<vmem>>, %arg2: memref<3x1xf32, #tpu.memory_space<vmem>>, %arg3: memref<8x27xbf16, #tpu.memory_space<vmem>>, %arg4: memref<8x1xf32, #tpu.memory_space<vmem>>, %arg5: memref<1x512xi32, #tpu.memory_space<vmem>>, %arg6: memref<1x512xi32, #tpu.memory_space<vmem>>, %arg7: memref<8x512xf32, #tpu.memory_space<vmem>>) attributes {dimension_semantics = [], scalar_prefetch = 0 : i64, scratch_operands = 0 : i64, tpu.core_type = #tpu.core_type<tc>} {
    %c0 = arith.constant 0 : index
    %c0_0 = arith.constant 0 : index
    %0 = vector.load %arg0[%c0, %c0_0] : memref<3x512xf32, #tpu.memory_space<vmem>>, vector<3x512xf32>
    %1 = arith.truncf %0 : vector<3x512xf32> to vector<3x512xbf16>
    %c0_1 = arith.constant 0 : index
    %c0_2 = arith.constant 0 : index
    %2 = vector.load %arg5[%c0_1, %c0_2] : memref<1x512xi32, #tpu.memory_space<vmem>>, vector<1x512xi32>
    %c0_3 = arith.constant 0 : index
    %c0_4 = arith.constant 0 : index
    %3 = vector.load %arg6[%c0_3, %c0_4] : memref<1x512xi32, #tpu.memory_space<vmem>>, vector<1x512xi32>
    %cst = arith.constant 0.000000e+00 : bf16
    %4 = vector.broadcast %cst : bf16 to vector<3x17xbf16>
    %5 = vector.extract_strided_slice %1 {offsets = [0, 0], sizes = [3, 495], strides = [1, 1]} : vector<3x512xbf16> to vector<3x495xbf16>
    %6 = tpu.concatenate %4, %5 in 1 : vector<3x17xbf16>, vector<3x495xbf16> -> vector<3x512xbf16>
    %c-1_i32 = arith.constant -1 : i32
    %7 = vector.broadcast %c-1_i32 : i32 to vector<1x512xi32>
    %8 = arith.addi %2, %7 : vector<1x512xi32>
    %c0_i32 = arith.constant 0 : i32
    %9 = vector.broadcast %c0_i32 : i32 to vector<1x512xi32>
    %10 = arith.cmpi sge, %8, %9 : vector<1x512xi32>
    %c-1_i32_5 = arith.constant -1 : i32
    %11 = vector.broadcast %c-1_i32_5 : i32 to vector<1x512xi32>
    %12 = arith.addi %2, %11 : vector<1x512xi32>
    %c16_i32 = arith.constant 16 : i32
    %13 = vector.broadcast %c16_i32 : i32 to vector<1x512xi32>
    %14 = arith.cmpi slt, %12, %13 : vector<1x512xi32>
    %15 = arith.andi %10, %14 : vector<1x512xi1>
    %c-1_i32_6 = arith.constant -1 : i32
    %16 = vector.broadcast %c-1_i32_6 : i32 to vector<1x512xi32>
    %17 = arith.addi %3, %16 : vector<1x512xi32>
    %c0_i32_7 = arith.constant 0 : i32
    %18 = vector.broadcast %c0_i32_7 : i32 to vector<1x512xi32>
    %19 = arith.cmpi sge, %17, %18 : vector<1x512xi32>
    %20 = arith.andi %15, %19 : vector<1x512xi1>
    %c-1_i32_8 = arith.constant -1 : i32
    %21 = vector.broadcast %c-1_i32_8 : i32 to vector<1x512xi32>
    %22 = arith.addi %3, %21 : vector<1x512xi32>
    %c16_i32_9 = arith.constant 16 : i32
    %23 = vector.broadcast %c16_i32_9 : i32 to vector<1x512xi32>
    %24 = arith.cmpi slt, %22, %23 : vector<1x512xi32>
    %25 = arith.andi %20, %24 : vector<1x512xi1>
    %cst_10 = arith.constant 0.000000e+00 : bf16
    %26 = vector.broadcast %cst_10 : bf16 to vector<3x512xbf16>
    %27 = vector.shape_cast %25 : vector<1x512xi1> to vector<1x512xi1>
    %28 = vector.broadcast %27 : vector<1x512xi1> to vector<3x512xi1>
    %29 = arith.select %28, %6, %26 : vector<3x512xi1>, vector<3x512xbf16>
    %cst_11 = arith.constant 0.000000e+00 : bf16
    %30 = vector.broadcast %cst_11 : bf16 to vector<3x16xbf16>
    %31 = vector.extract_strided_slice %1 {offsets = [0, 0], sizes = [3, 496], strides = [1, 1]} : vector<3x512xbf16> to vector<3x496xbf16>
    %32 = tpu.concatenate %30, %31 in 1 : vector<3x16xbf16>, vector<3x496xbf16> -> vector<3x512xbf16>
    %c-1_i32_12 = arith.constant -1 : i32
    %33 = vector.broadcast %c-1_i32_12 : i32 to vector<1x512xi32>
    %34 = arith.addi %2, %33 : vector<1x512xi32>
    %c0_i32_13 = arith.constant 0 : i32
    %35 = vector.broadcast %c0_i32_13 : i32 to vector<1x512xi32>
    %36 = arith.cmpi sge, %34, %35 : vector<1x512xi32>
    %c-1_i32_14 = arith.constant -1 : i32
    %37 = vector.broadcast %c-1_i32_14 : i32 to vector<1x512xi32>
    %38 = arith.addi %2, %37 : vector<1x512xi32>
    %c16_i32_15 = arith.constant 16 : i32
    %39 = vector.broadcast %c16_i32_15 : i32 to vector<1x512xi32>
    %40 = arith.cmpi slt, %38, %39 : vector<1x512xi32>
    %41 = arith.andi %36, %40 : vector<1x512xi1>
    %c0_i32_16 = arith.constant 0 : i32
    %42 = vector.broadcast %c0_i32_16 : i32 to vector<1x512xi32>
    %43 = arith.addi %3, %42 : vector<1x512xi32>
    %c0_i32_17 = arith.constant 0 : i32
    %44 = vector.broadcast %c0_i32_17 : i32 to vector<1x512xi32>
    %45 = arith.cmpi sge, %43, %44 : vector<1x512xi32>
    %46 = arith.andi %41, %45 : vector<1x512xi1>
    %c0_i32_18 = arith.constant 0 : i32
    %47 = vector.broadcast %c0_i32_18 : i32 to vector<1x512xi32>
    %48 = arith.addi %3, %47 : vector<1x512xi32>
    %c16_i32_19 = arith.constant 16 : i32
    %49 = vector.broadcast %c16_i32_19 : i32 to vector<1x512xi32>
    %50 = arith.cmpi slt, %48, %49 : vector<1x512xi32>
    %51 = arith.andi %46, %50 : vector<1x512xi1>
    %cst_20 = arith.constant 0.000000e+00 : bf16
    %52 = vector.broadcast %cst_20 : bf16 to vector<3x512xbf16>
    %53 = vector.shape_cast %51 : vector<1x512xi1> to vector<1x512xi1>
    %54 = vector.broadcast %53 : vector<1x512xi1> to vector<3x512xi1>
    %55 = arith.select %54, %32, %52 : vector<3x512xi1>, vector<3x512xbf16>
    %cst_21 = arith.constant 0.000000e+00 : bf16
    %56 = vector.broadcast %cst_21 : bf16 to vector<3x15xbf16>
    %57 = vector.extract_strided_slice %1 {offsets = [0, 0], sizes = [3, 497], strides = [1, 1]} : vector<3x512xbf16> to vector<3x497xbf16>
    %58 = tpu.concatenate %56, %57 in 1 : vector<3x15xbf16>, vector<3x497xbf16> -> vector<3x512xbf16>
    %c-1_i32_22 = arith.constant -1 : i32
    %59 = vector.broadcast %c-1_i32_22 : i32 to vector<1x512xi32>
    %60 = arith.addi %2, %59 : vector<1x512xi32>
    %c0_i32_23 = arith.constant 0 : i32
    %61 = vector.broadcast %c0_i32_23 : i32 to vector<1x512xi32>
    %62 = arith.cmpi sge, %60, %61 : vector<1x512xi32>
    %c-1_i32_24 = arith.constant -1 : i32
    %63 = vector.broadcast %c-1_i32_24 : i32 to vector<1x512xi32>
    %64 = arith.addi %2, %63 : vector<1x512xi32>
    %c16_i32_25 = arith.constant 16 : i32
    %65 = vector.broadcast %c16_i32_25 : i32 to vector<1x512xi32>
    %66 = arith.cmpi slt, %64, %65 : vector<1x512xi32>
    %67 = arith.andi %62, %66 : vector<1x512xi1>
    %c1_i32 = arith.constant 1 : i32
    %68 = vector.broadcast %c1_i32 : i32 to vector<1x512xi32>
    %69 = arith.addi %3, %68 : vector<1x512xi32>
    %c0_i32_26 = arith.constant 0 : i32
    %70 = vector.broadcast %c0_i32_26 : i32 to vector<1x512xi32>
    %71 = arith.cmpi sge, %69, %70 : vector<1x512xi32>
    %72 = arith.andi %67, %71 : vector<1x512xi1>
    %c1_i32_27 = arith.constant 1 : i32
    %73 = vector.broadcast %c1_i32_27 : i32 to vector<1x512xi32>
    %74 = arith.addi %3, %73 : vector<1x512xi32>
    %c16_i32_28 = arith.constant 16 : i32
    %75 = vector.broadcast %c16_i32_28 : i32 to vector<1x512xi32>
    %76 = arith.cmpi slt, %74, %75 : vector<1x512xi32>
    %77 = arith.andi %72, %76 : vector<1x512xi1>
    %cst_29 = arith.constant 0.000000e+00 : bf16
    %78 = vector.broadcast %cst_29 : bf16 to vector<3x512xbf16>
    %79 = vector.shape_cast %77 : vector<1x512xi1> to vector<1x512xi1>
    %80 = vector.broadcast %79 : vector<1x512xi1> to vector<3x512xi1>
    %81 = arith.select %80, %58, %78 : vector<3x512xi1>, vector<3x512xbf16>
    %cst_30 = arith.constant 0.000000e+00 : bf16
    %82 = vector.broadcast %cst_30 : bf16 to vector<3x1xbf16>
    %83 = vector.extract_strided_slice %1 {offsets = [0, 0], sizes = [3, 511], strides = [1, 1]} : vector<3x512xbf16> to vector<3x511xbf16>
    %84 = tpu.concatenate %82, %83 in 1 : vector<3x1xbf16>, vector<3x511xbf16> -> vector<3x512xbf16>
    %c0_i32_31 = arith.constant 0 : i32
    %85 = vector.broadcast %c0_i32_31 : i32 to vector<1x512xi32>
    %86 = arith.addi %2, %85 : vector<1x512xi32>
    %c0_i32_32 = arith.constant 0 : i32
    %87 = vector.broadcast %c0_i32_32 : i32 to vector<1x512xi32>
    %88 = arith.cmpi sge, %86, %87 : vector<1x512xi32>
    %c0_i32_33 = arith.constant 0 : i32
    %89 = vector.broadcast %c0_i32_33 : i32 to vector<1x512xi32>
    %90 = arith.addi %2, %89 : vector<1x512xi32>
    %c16_i32_34 = arith.constant 16 : i32
    %91 = vector.broadcast %c16_i32_34 : i32 to vector<1x512xi32>
    %92 = arith.cmpi slt, %90, %91 : vector<1x512xi32>
    %93 = arith.andi %88, %92 : vector<1x512xi1>
    %c-1_i32_35 = arith.constant -1 : i32
    %94 = vector.broadcast %c-1_i32_35 : i32 to vector<1x512xi32>
    %95 = arith.addi %3, %94 : vector<1x512xi32>
    %c0_i32_36 = arith.constant 0 : i32
    %96 = vector.broadcast %c0_i32_36 : i32 to vector<1x512xi32>
    %97 = arith.cmpi sge, %95, %96 : vector<1x512xi32>
    %98 = arith.andi %93, %97 : vector<1x512xi1>
    %c-1_i32_37 = arith.constant -1 : i32
    %99 = vector.broadcast %c-1_i32_37 : i32 to vector<1x512xi32>
    %100 = arith.addi %3, %99 : vector<1x512xi32>
    %c16_i32_38 = arith.constant 16 : i32
    %101 = vector.broadcast %c16_i32_38 : i32 to vector<1x512xi32>
    %102 = arith.cmpi slt, %100, %101 : vector<1x512xi32>
    %103 = arith.andi %98, %102 : vector<1x512xi1>
    %cst_39 = arith.constant 0.000000e+00 : bf16
    %104 = vector.broadcast %cst_39 : bf16 to vector<3x512xbf16>
    %105 = vector.shape_cast %103 : vector<1x512xi1> to vector<1x512xi1>
    %106 = vector.broadcast %105 : vector<1x512xi1> to vector<3x512xi1>
    %107 = arith.select %106, %84, %104 : vector<3x512xi1>, vector<3x512xbf16>
    %c0_i32_40 = arith.constant 0 : i32
    %108 = vector.broadcast %c0_i32_40 : i32 to vector<1x512xi32>
    %109 = arith.addi %2, %108 : vector<1x512xi32>
    %c0_i32_41 = arith.constant 0 : i32
    %110 = vector.broadcast %c0_i32_41 : i32 to vector<1x512xi32>
    %111 = arith.cmpi sge, %109, %110 : vector<1x512xi32>
    %c0_i32_42 = arith.constant 0 : i32
    %112 = vector.broadcast %c0_i32_42 : i32 to vector<1x512xi32>
    %113 = arith.addi %2, %112 : vector<1x512xi32>
    %c16_i32_43 = arith.constant 16 : i32
    %114 = vector.broadcast %c16_i32_43 : i32 to vector<1x512xi32>
    %115 = arith.cmpi slt, %113, %114 : vector<1x512xi32>
    %116 = arith.andi %111, %115 : vector<1x512xi1>
    %c0_i32_44 = arith.constant 0 : i32
    %117 = vector.broadcast %c0_i32_44 : i32 to vector<1x512xi32>
    %118 = arith.addi %3, %117 : vector<1x512xi32>
    %c0_i32_45 = arith.constant 0 : i32
    %119 = vector.broadcast %c0_i32_45 : i32 to vector<1x512xi32>
    %120 = arith.cmpi sge, %118, %119 : vector<1x512xi32>
    %121 = arith.andi %116, %120 : vector<1x512xi1>
    %c0_i32_46 = arith.constant 0 : i32
    %122 = vector.broadcast %c0_i32_46 : i32 to vector<1x512xi32>
    %123 = arith.addi %3, %122 : vector<1x512xi32>
    %c16_i32_47 = arith.constant 16 : i32
    %124 = vector.broadcast %c16_i32_47 : i32 to vector<1x512xi32>
    %125 = arith.cmpi slt, %123, %124 : vector<1x512xi32>
    %126 = arith.andi %121, %125 : vector<1x512xi1>
    %cst_48 = arith.constant 0.000000e+00 : bf16
    %127 = vector.broadcast %cst_48 : bf16 to vector<3x512xbf16>
    %128 = vector.shape_cast %126 : vector<1x512xi1> to vector<1x512xi1>
    %129 = vector.broadcast %128 : vector<1x512xi1> to vector<3x512xi1>
    %130 = arith.select %129, %1, %127 : vector<3x512xi1>, vector<3x512xbf16>
    %cst_49 = arith.constant 0.000000e+00 : bf16
    %131 = vector.broadcast %cst_49 : bf16 to vector<3x1xbf16>
    %132 = vector.extract_strided_slice %1 {offsets = [0, 1], sizes = [3, 511], strides = [1, 1]} : vector<3x512xbf16> to vector<3x511xbf16>
    %133 = tpu.concatenate %132, %131 in 1 : vector<3x511xbf16>, vector<3x1xbf16> -> vector<3x512xbf16>
    %c0_i32_50 = arith.constant 0 : i32
    %134 = vector.broadcast %c0_i32_50 : i32 to vector<1x512xi32>
    %135 = arith.addi %2, %134 : vector<1x512xi32>
    %c0_i32_51 = arith.constant 0 : i32
    %136 = vector.broadcast %c0_i32_51 : i32 to vector<1x512xi32>
    %137 = arith.cmpi sge, %135, %136 : vector<1x512xi32>
    %c0_i32_52 = arith.constant 0 : i32
    %138 = vector.broadcast %c0_i32_52 : i32 to vector<1x512xi32>
    %139 = arith.addi %2, %138 : vector<1x512xi32>
    %c16_i32_53 = arith.constant 16 : i32
    %140 = vector.broadcast %c16_i32_53 : i32 to vector<1x512xi32>
    %141 = arith.cmpi slt, %139, %140 : vector<1x512xi32>
    %142 = arith.andi %137, %141 : vector<1x512xi1>
    %c1_i32_54 = arith.constant 1 : i32
    %143 = vector.broadcast %c1_i32_54 : i32 to vector<1x512xi32>
    %144 = arith.addi %3, %143 : vector<1x512xi32>
    %c0_i32_55 = arith.constant 0 : i32
    %145 = vector.broadcast %c0_i32_55 : i32 to vector<1x512xi32>
    %146 = arith.cmpi sge, %144, %145 : vector<1x512xi32>
    %147 = arith.andi %142, %146 : vector<1x512xi1>
    %c1_i32_56 = arith.constant 1 : i32
    %148 = vector.broadcast %c1_i32_56 : i32 to vector<1x512xi32>
    %149 = arith.addi %3, %148 : vector<1x512xi32>
    %c16_i32_57 = arith.constant 16 : i32
    %150 = vector.broadcast %c16_i32_57 : i32 to vector<1x512xi32>
    %151 = arith.cmpi slt, %149, %150 : vector<1x512xi32>
    %152 = arith.andi %147, %151 : vector<1x512xi1>
    %cst_58 = arith.constant 0.000000e+00 : bf16
    %153 = vector.broadcast %cst_58 : bf16 to vector<3x512xbf16>
    %154 = vector.shape_cast %152 : vector<1x512xi1> to vector<1x512xi1>
    %155 = vector.broadcast %154 : vector<1x512xi1> to vector<3x512xi1>
    %156 = arith.select %155, %133, %153 : vector<3x512xi1>, vector<3x512xbf16>
    %cst_59 = arith.constant 0.000000e+00 : bf16
    %157 = vector.broadcast %cst_59 : bf16 to vector<3x15xbf16>
    %158 = vector.extract_strided_slice %1 {offsets = [0, 15], sizes = [3, 497], strides = [1, 1]} : vector<3x512xbf16> to vector<3x497xbf16>
    %159 = tpu.concatenate %158, %157 in 1 : vector<3x497xbf16>, vector<3x15xbf16> -> vector<3x512xbf16>
    %c1_i32_60 = arith.constant 1 : i32
    %160 = vector.broadcast %c1_i32_60 : i32 to vector<1x512xi32>
    %161 = arith.addi %2, %160 : vector<1x512xi32>
    %c0_i32_61 = arith.constant 0 : i32
    %162 = vector.broadcast %c0_i32_61 : i32 to vector<1x512xi32>
    %163 = arith.cmpi sge, %161, %162 : vector<1x512xi32>
    %c1_i32_62 = arith.constant 1 : i32
    %164 = vector.broadcast %c1_i32_62 : i32 to vector<1x512xi32>
    %165 = arith.addi %2, %164 : vector<1x512xi32>
    %c16_i32_63 = arith.constant 16 : i32
    %166 = vector.broadcast %c16_i32_63 : i32 to vector<1x512xi32>
    %167 = arith.cmpi slt, %165, %166 : vector<1x512xi32>
    %168 = arith.andi %163, %167 : vector<1x512xi1>
    %c-1_i32_64 = arith.constant -1 : i32
    %169 = vector.broadcast %c-1_i32_64 : i32 to vector<1x512xi32>
    %170 = arith.addi %3, %169 : vector<1x512xi32>
    %c0_i32_65 = arith.constant 0 : i32
    %171 = vector.broadcast %c0_i32_65 : i32 to vector<1x512xi32>
    %172 = arith.cmpi sge, %170, %171 : vector<1x512xi32>
    %173 = arith.andi %168, %172 : vector<1x512xi1>
    %c-1_i32_66 = arith.constant -1 : i32
    %174 = vector.broadcast %c-1_i32_66 : i32 to vector<1x512xi32>
    %175 = arith.addi %3, %174 : vector<1x512xi32>
    %c16_i32_67 = arith.constant 16 : i32
    %176 = vector.broadcast %c16_i32_67 : i32 to vector<1x512xi32>
    %177 = arith.cmpi slt, %175, %176 : vector<1x512xi32>
    %178 = arith.andi %173, %177 : vector<1x512xi1>
    %cst_68 = arith.constant 0.000000e+00 : bf16
    %179 = vector.broadcast %cst_68 : bf16 to vector<3x512xbf16>
    %180 = vector.shape_cast %178 : vector<1x512xi1> to vector<1x512xi1>
    %181 = vector.broadcast %180 : vector<1x512xi1> to vector<3x512xi1>
    %182 = arith.select %181, %159, %179 : vector<3x512xi1>, vector<3x512xbf16>
    %cst_69 = arith.constant 0.000000e+00 : bf16
    %183 = vector.broadcast %cst_69 : bf16 to vector<3x16xbf16>
    %184 = vector.extract_strided_slice %1 {offsets = [0, 16], sizes = [3, 496], strides = [1, 1]} : vector<3x512xbf16> to vector<3x496xbf16>
    %185 = tpu.concatenate %184, %183 in 1 : vector<3x496xbf16>, vector<3x16xbf16> -> vector<3x512xbf16>
    %c1_i32_70 = arith.constant 1 : i32
    %186 = vector.broadcast %c1_i32_70 : i32 to vector<1x512xi32>
    %187 = arith.addi %2, %186 : vector<1x512xi32>
    %c0_i32_71 = arith.constant 0 : i32
    %188 = vector.broadcast %c0_i32_71 : i32 to vector<1x512xi32>
    %189 = arith.cmpi sge, %187, %188 : vector<1x512xi32>
    %c1_i32_72 = arith.constant 1 : i32
    %190 = vector.broadcast %c1_i32_72 : i32 to vector<1x512xi32>
    %191 = arith.addi %2, %190 : vector<1x512xi32>
    %c16_i32_73 = arith.constant 16 : i32
    %192 = vector.broadcast %c16_i32_73 : i32 to vector<1x512xi32>
    %193 = arith.cmpi slt, %191, %192 : vector<1x512xi32>
    %194 = arith.andi %189, %193 : vector<1x512xi1>
    %c0_i32_74 = arith.constant 0 : i32
    %195 = vector.broadcast %c0_i32_74 : i32 to vector<1x512xi32>
    %196 = arith.addi %3, %195 : vector<1x512xi32>
    %c0_i32_75 = arith.constant 0 : i32
    %197 = vector.broadcast %c0_i32_75 : i32 to vector<1x512xi32>
    %198 = arith.cmpi sge, %196, %197 : vector<1x512xi32>
    %199 = arith.andi %194, %198 : vector<1x512xi1>
    %c0_i32_76 = arith.constant 0 : i32
    %200 = vector.broadcast %c0_i32_76 : i32 to vector<1x512xi32>
    %201 = arith.addi %3, %200 : vector<1x512xi32>
    %c16_i32_77 = arith.constant 16 : i32
    %202 = vector.broadcast %c16_i32_77 : i32 to vector<1x512xi32>
    %203 = arith.cmpi slt, %201, %202 : vector<1x512xi32>
    %204 = arith.andi %199, %203 : vector<1x512xi1>
    %cst_78 = arith.constant 0.000000e+00 : bf16
    %205 = vector.broadcast %cst_78 : bf16 to vector<3x512xbf16>
    %206 = vector.shape_cast %204 : vector<1x512xi1> to vector<1x512xi1>
    %207 = vector.broadcast %206 : vector<1x512xi1> to vector<3x512xi1>
    %208 = arith.select %207, %185, %205 : vector<3x512xi1>, vector<3x512xbf16>
    %cst_79 = arith.constant 0.000000e+00 : bf16
    %209 = vector.broadcast %cst_79 : bf16 to vector<3x17xbf16>
    %210 = vector.extract_strided_slice %1 {offsets = [0, 17], sizes = [3, 495], strides = [1, 1]} : vector<3x512xbf16> to vector<3x495xbf16>
    %211 = tpu.concatenate %210, %209 in 1 : vector<3x495xbf16>, vector<3x17xbf16> -> vector<3x512xbf16>
    %c1_i32_80 = arith.constant 1 : i32
    %212 = vector.broadcast %c1_i32_80 : i32 to vector<1x512xi32>
    %213 = arith.addi %2, %212 : vector<1x512xi32>
    %c0_i32_81 = arith.constant 0 : i32
    %214 = vector.broadcast %c0_i32_81 : i32 to vector<1x512xi32>
    %215 = arith.cmpi sge, %213, %214 : vector<1x512xi32>
    %c1_i32_82 = arith.constant 1 : i32
    %216 = vector.broadcast %c1_i32_82 : i32 to vector<1x512xi32>
    %217 = arith.addi %2, %216 : vector<1x512xi32>
    %c16_i32_83 = arith.constant 16 : i32
    %218 = vector.broadcast %c16_i32_83 : i32 to vector<1x512xi32>
    %219 = arith.cmpi slt, %217, %218 : vector<1x512xi32>
    %220 = arith.andi %215, %219 : vector<1x512xi1>
    %c1_i32_84 = arith.constant 1 : i32
    %221 = vector.broadcast %c1_i32_84 : i32 to vector<1x512xi32>
    %222 = arith.addi %3, %221 : vector<1x512xi32>
    %c0_i32_85 = arith.constant 0 : i32
    %223 = vector.broadcast %c0_i32_85 : i32 to vector<1x512xi32>
    %224 = arith.cmpi sge, %222, %223 : vector<1x512xi32>
    %225 = arith.andi %220, %224 : vector<1x512xi1>
    %c1_i32_86 = arith.constant 1 : i32
    %226 = vector.broadcast %c1_i32_86 : i32 to vector<1x512xi32>
    %227 = arith.addi %3, %226 : vector<1x512xi32>
    %c16_i32_87 = arith.constant 16 : i32
    %228 = vector.broadcast %c16_i32_87 : i32 to vector<1x512xi32>
    %229 = arith.cmpi slt, %227, %228 : vector<1x512xi32>
    %230 = arith.andi %225, %229 : vector<1x512xi1>
    %cst_88 = arith.constant 0.000000e+00 : bf16
    %231 = vector.broadcast %cst_88 : bf16 to vector<3x512xbf16>
    %232 = vector.shape_cast %230 : vector<1x512xi1> to vector<1x512xi1>
    %233 = vector.broadcast %232 : vector<1x512xi1> to vector<3x512xi1>
    %234 = arith.select %233, %211, %231 : vector<3x512xi1>, vector<3x512xbf16>
    %235 = tpu.concatenate %29, %55, %81, %107, %130, %156, %182, %208, %234 in 0 : vector<3x512xbf16>, vector<3x512xbf16>, vector<3x512xbf16>, vector<3x512xbf16>, vector<3x512xbf16>, vector<3x512xbf16>, vector<3x512xbf16>, vector<3x512xbf16>, vector<3x512xbf16> -> vector<27x512xbf16>
    %c0_89 = arith.constant 0 : index
    %c0_90 = arith.constant 0 : index
    %236 = vector.load %arg3[%c0_89, %c0_90] : memref<8x27xbf16, #tpu.memory_space<vmem>>, vector<8x27xbf16>
    %cst_91 = arith.constant dense<0.000000e+00> : vector<8x512xf32>
    %237 = tpu.matmul %236, %235, %cst_91 {dimension_numbers = #tpu.dot_dimension_numbers<[1], [0], [0], [1], [0, 0, 1, 1], [], []>} : vector<8x27xbf16>, vector<27x512xbf16>, vector<8x512xf32> -> vector<8x512xf32>
    %c0_92 = arith.constant 0 : index
    %c0_93 = arith.constant 0 : index
    %238 = vector.load %arg4[%c0_92, %c0_93] : memref<8x1xf32, #tpu.memory_space<vmem>>, vector<8x1xf32>
    %239 = vector.broadcast %238 : vector<8x1xf32> to vector<8x512xf32>
    %240 = arith.addf %237, %239 : vector<8x512xf32>
    %c0_94 = arith.constant 0 : index
    %c0_95 = arith.constant 0 : index
    %241 = vector.load %arg7[%c0_94, %c0_95] : memref<8x512xf32, #tpu.memory_space<vmem>>, vector<8x512xf32>
    tpu.vector_store %arg7[%c0_94, %c0_95], %240 {strides = array<i32>} : memref<8x512xf32, #tpu.memory_space<vmem>>, vector<8x512xf32>,
    return
  }
}

</mosaic_0001>

<llo_original>
// kernel: tpu_custom_call.1
$region0: #{tpu_custom_call.1}
  #allocation0 [shape = 'u32[]', space=smem, size = 0x4, offset = 0x4, fixed_abs, tag = 'smem constant byte address 0x4 - core index']
  #allocation1 [shape = 'u32[144,128]{1,0:T(1,128)}', space=vmem, size = 0x12000, scoped, tag = 'internal scratch']
  %s0 = inlined_call_operand.vmem [shape: f32[3,512], index: 0, kind: input, shape index: {}]
  %s1 = inlined_call_operand.vmem [shape: f32[3,1], index: 1, kind: input, shape index: {}]
  %s2 = inlined_call_operand.vmem [shape: f32[3,1], index: 2, kind: input, shape index: {}]
  %s3 = inlined_call_operand.vmem [shape: bf16[8,27], index: 3, kind: input, shape index: {}]
  %s4 = inlined_call_operand.vmem [shape: f32[8,1], index: 4, kind: input, shape index: {}]
  %s5 = inlined_call_operand.vmem [shape: s32[1,512], index: 5, kind: input, shape index: {}]
  %s6 = inlined_call_operand.vmem [shape: s32[1,512], index: 6, kind: input, shape index: {}]
  %s7 = inlined_call_operand.hbm [shape: f32[8,512], index: 7, kind: output, shape index: {}]
  %s8 = sld [smem:[#allocation0]]
  $region38: #{tpu_custom_call.1} parent=0
    _
  %s10 = ssub.s32 1, %s8
  %s11 = scalar_select 0, %s10, %s8
  $region1: #{tpu_custom_call.1} parent=0
    #allocation2 [shape = 'u8[16384]{0}', space=vmem, size = 0x4000, scoped, tag = 'output window, operand 0, single buffered']
    #allocation3 [shape = 's32[1]{0}', space=sflag, size = 0x4, scoped, tag = 'scoped memory for tpu_custom_call.1']
    %12 = vsyncpa [#allocation3], 0
    // Predicated region
    $region2: #{tpu_custom_call.1} parent=1 // pred_check
      _
    $region3: #{tpu_custom_call.1} parent=1 // pred_check_branch
      %14 = sbr.rel (0) target = $region5
    $region4: #{tpu_custom_call.1} parent=1 // pred_region
      _
    $region5: #{tpu_custom_call.1} parent=1 // pred_fallthru
      _
    // Predicated region
    $region6: #{tpu_custom_call.1} parent=1 // pred_check
      _
    $region7: #{tpu_custom_call.1} parent=1 // pred_check_branch
      %16 = sbr.rel (0) target = $region9
    $region8: #{tpu_custom_call.1} parent=1 // pred_region
      _
    $region9: #{tpu_custom_call.1} parent=1 // pred_fallthru
      _
    // Predicated region
    $region10: #{tpu_custom_call.1} parent=1 // pred_check
      _
    $region11: #{tpu_custom_call.1} parent=1 // pred_check_branch
      %18 = sbr.rel (0) target = $region13
    $region12: #{tpu_custom_call.1} parent=1 // pred_region
      _
    $region13: #{tpu_custom_call.1} parent=1 // pred_fallthru
      _
    // Predicated region
    $region14: #{tpu_custom_call.1} parent=1 // pred_check
      _
    $region15: #{tpu_custom_call.1} parent=1 // pred_check_branch
      %20 = sbr.rel (0) target = $region17
    $region16: #{tpu_custom_call.1} parent=1 // pred_region
      _
    $region17: #{tpu_custom_call.1} parent=1 // pred_fallthru
      _
    // Predicated region
    $region18: #{tpu_custom_call.1} parent=1 // pred_check
      _
    $region19: #{tpu_custom_call.1} parent=1 // pred_check_branch
      %22 = sbr.rel (0) target = $region21
    $region20: #{tpu_custom_call.1} parent=1 // pred_region
      _
    $region21: #{tpu_custom_call.1} parent=1 // pred_fallthru
      _
    // Predicated region
    $region22: #{tpu_custom_call.1} parent=1 // pred_check
      _
    $region23: #{tpu_custom_call.1} parent=1 // pred_check_branch
      %24 = sbr.rel (0) target = $region25
    $region24: #{tpu_custom_call.1} parent=1 // pred_region
      _
    $region25: #{tpu_custom_call.1} parent=1 // pred_fallthru
      _
    // Predicated region
    $region26: #{tpu_custom_call.1} parent=1 // pred_check
      _
    $region27: #{tpu_custom_call.1} parent=1 // pred_check_branch
      %26 = sbr.rel (0) target = $region29
    $region28: #{tpu_custom_call.1} parent=1 // pred_region
      _
    $region29: #{tpu_custom_call.1} parent=1 // pred_fallthru
      _
    %v30 = vld [vmem:[%s0] sm:$0x77]
    %v31 = vld [vmem:[%s0 + $0x8] sm:$0x77]
    %v34 = vcombine.high %v30, %v30
    %v35 = vcombine.high %v31, %v31
    %v38 = vpack.c.bf16 %v30, %v30
    %v39 = vpack.c.bf16 %v34, %v34
    %v40 = vpack.c.bf16 %v31, %v31
    %v41 = vpack.c.bf16 %v35, %v35
    %v42 = vld [vmem:[%s5] sm:$0xf]
    %v43 = vld [vmem:[%s6] sm:$0xf]
    %48 = vrot.lane.b32.xlu0 %v38, 17
    %v49 = vpop.permute.xlu0 %48
    %50 = vrot.lane.b32.xlu0 %v39, 17
    %v51 = vpop.permute.xlu0 %50
    %52 = vrot.lane.b32.xlu0 %v40, 17
    %v53 = vpop.permute.xlu0 %52
    %54 = vrot.lane.b32.xlu0 %v41, 17
    %v55 = vpop.permute.xlu0 %54
    %vm56 = vcmask 138240
    %v57 = vsel %vm56, %v49, %v51
    %v58 = vsel %vm56, %v51, %v53
    %v59 = vsel %vm56, %v53, %v55
    %vm63 = vcmask 138240
    %v66 = vsel %vm63, 0, %v49
    %v68 = vadd.s32 %v42, 4294967295
    %vm69 = vcmp.ge.s32.totalorder %v68, 0
    %vm70 = vcmp.lt.s32.totalorder %v68, 16
    %vm71 = vmand %vm69, %vm70
    %v72 = vadd.s32 %v43, 4294967295
    %vm73 = vcmp.ge.s32.totalorder %v72, 0
    %vm74 = vmand %vm71, %vm73
    %vm75 = vcmp.lt.s32.totalorder %v72, 16
    %vm76 = vmand %vm74, %vm75
    %v77 = vsel %vm76, 1, 0
    %v78 = vlaneseq
    %v79 = vshrl.u32 %v78, 7
    %v80 = vsub.s32 0, %v79
    %v81 = vrot.slane %v77, %v80
    %v82 = vlaneseq
    %v83 = vshrl.u32 %v82, 7
    %v84 = vsub.s32 1, %v83
    %v85 = vrot.slane %v77, %v84
    %v86 = vlaneseq
    %v87 = vshrl.u32 %v86, 7
    %v88 = vsub.s32 2, %v87
    %v89 = vrot.slane %v77, %v88
    %v90 = vlaneseq
    %v91 = vshrl.u32 %v90, 7
    %v92 = vsub.s32 3, %v91
    %v93 = vrot.slane %v77, %v92
    %vm94 = vcmp.eq.s32.totalorder %v81, 1
    %vm95 = vcmp.eq.s32.totalorder %v85, 1
    %vm96 = vcmp.eq.s32.totalorder %v89, 1
    %vm97 = vcmp.eq.s32.totalorder %v93, 1
    %vm98 = vmpackc.low %vm95, %vm94
    %vm99 = vmpackc.low %vm97, %vm96
    %v100 = vsel %vm98, 65537, 0
    %v101 = vsel %vm99, 65537, 0
    %v102 = vlaneseq
    %v103 = vshrl.u32 %v102, 7
    %v104 = vsub.s32 0, %v103
    %v105 = vrot.slane %v100, %v104
    %v106 = vlaneseq
    %v107 = vshrl.u32 %v106, 7
    %v108 = vsub.s32 4, %v107
    %v109 = vrot.slane %v100, %v108
    %v110 = vlaneseq
    %v111 = vshrl.u32 %v110, 7
    %v112 = vsub.s32 0, %v111
    %v113 = vrot.slane %v101, %v112
    %v114 = vlaneseq
    %v115 = vshrl.u32 %v114, 7
    %v116 = vsub.s32 4, %v115
    %v117 = vrot.slane %v101, %v116
    %vm118 = vcmp.ne.s16.totalorder %v105, 0
    %vm119 = vcmp.ne.s16.totalorder %v109, 0
    %vm120 = vcmp.ne.s16.totalorder %v113, 0
    %vm121 = vcmp.ne.s16.totalorder %v117, 0
    %v122 = vsel %vm118, %v66, 0
    %v123 = vsel %vm119, %v57, 0
    %v124 = vsel %vm120, %v58, 0
    %v125 = vsel %vm121, %v59, 0
    %126 = vrot.lane.b32.xlu0 %v38, 16
    %v127 = vpop.permute.xlu0 %126
    %128 = vrot.lane.b32.xlu0 %v39, 16
    %v129 = vpop.permute.xlu0 %128
    %130 = vrot.lane.b32.xlu0 %v40, 16
    %v131 = vpop.permute.xlu0 %130
    %132 = vrot.lane.b32.xlu0 %v41, 16
    %v133 = vpop.permute.xlu0 %132
    %vm134 = vcmask 130048
    %v135 = vsel %vm134, %v127, %v129
    %v136 = vsel %vm134, %v129, %v131
    %v137 = vsel %vm134, %v131, %v133
    %vm141 = vcmask 130048
    %v143 = vsel %vm141, 0, %v127
    %vm145 = vcmp.ge.s32.totalorder %v43, 0
    %vm146 = vmand %vm71, %vm145
    %vm147 = vcmp.lt.s32.totalorder %v43, 16
    %vm148 = vmand %vm146, %vm147
    %v149 = vsel %vm148, 1, 0
    %v150 = vlaneseq
    %v151 = vshrl.u32 %v150, 7
    %v152 = vsub.s32 0, %v151
    %v153 = vrot.slane %v149, %v152
    %v154 = vlaneseq
    %v155 = vshrl.u32 %v154, 7
    %v156 = vsub.s32 1, %v155
    %v157 = vrot.slane %v149, %v156
    %v158 = vlaneseq
    %v159 = vshrl.u32 %v158, 7
    %v160 = vsub.s32 2, %v159
    %v161 = vrot.slane %v149, %v160
    %v162 = vlaneseq
    %v163 = vshrl.u32 %v162, 7
    %v164 = vsub.s32 3, %v163
    %v165 = vrot.slane %v149, %v164
    %vm166 = vcmp.eq.s32.totalorder %v153, 1
    %vm167 = vcmp.eq.s32.totalorder %v157, 1
    %vm168 = vcmp.eq.s32.totalorder %v161, 1
    %vm169 = vcmp.eq.s32.totalorder %v165, 1
    %vm170 = vmpackc.low %vm167, %vm166
    %vm171 = vmpackc.low %vm169, %vm168
    %v172 = vsel %vm170, 65537, 0
    %v173 = vsel %vm171, 65537, 0
    %v174 = vlaneseq
    %v175 = vshrl.u32 %v174, 7
    %v176 = vsub.s32 0, %v175
    %v177 = vrot.slane %v172, %v176
    %v178 = vlaneseq
    %v179 = vshrl.u32 %v178, 7
    %v180 = vsub.s32 4, %v179
    %v181 = vrot.slane %v172, %v180
    %v182 = vlaneseq
    %v183 = vshrl.u32 %v182, 7
    %v184 = vsub.s32 0, %v183
    %v185 = vrot.slane %v173, %v184
    %v186 = vlaneseq
    %v187 = vshrl.u32 %v186, 7
    %v188 = vsub.s32 4, %v187
    %v189 = vrot.slane %v173, %v188
    %vm190 = vcmp.ne.s16.totalorder %v177, 0
    %vm191 = vcmp.ne.s16.totalorder %v181, 0
    %vm192 = vcmp.ne.s16.totalorder %v185, 0
    %vm193 = vcmp.ne.s16.totalorder %v189, 0
    %v194 = vsel %vm190, %v143, 0
    %v195 = vsel %vm191, %v135, 0
    %v196 = vsel %vm192, %v136, 0
    %v197 = vsel %vm193, %v137, 0
    %198 = vrot.lane.b32.xlu0 %v38, 15
    %v199 = vpop.permute.xlu0 %198
    %200 = vrot.lane.b32.xlu0 %v39, 15
    %v201 = vpop.permute.xlu0 %200
    %202 = vrot.lane.b32.xlu0 %v40, 15
    %v203 = vpop.permute.xlu0 %202
    %204 = vrot.lane.b32.xlu0 %v41, 15
    %v205 = vpop.permute.xlu0 %204
    %vm206 = vcmask 121856
    %v207 = vsel %vm206, %v199, %v201
    %v208 = vsel %vm206, %v201, %v203
    %v209 = vsel %vm206, %v203, %v205
    %vm213 = vcmask 121856
    %v215 = vsel %vm213, 0, %v199
    %v217 = vadd.s32 %v43, 1
    %vm218 = vcmp.ge.s32.totalorder %v217, 0
    %vm219 = vmand %vm71, %vm218
    %vm220 = vcmp.lt.s32.totalorder %v217, 16
    %vm221 = vmand %vm219, %vm220
    %v222 = vsel %vm221, 1, 0
    %v223 = vlaneseq
    %v224 = vshrl.u32 %v223, 7
    %v225 = vsub.s32 0, %v224
    %v226 = vrot.slane %v222, %v225
    %v227 = vlaneseq
    %v228 = vshrl.u32 %v227, 7
    %v229 = vsub.s32 1, %v228
    %v230 = vrot.slane %v222, %v229
    %v231 = vlaneseq
    %v232 = vshrl.u32 %v231, 7
    %v233 = vsub.s32 2, %v232
    %v234 = vrot.slane %v222, %v233
    %v235 = vlaneseq
    %v236 = vshrl.u32 %v235, 7
    %v237 = vsub.s32 3, %v236
    %v238 = vrot.slane %v222, %v237
    %vm239 = vcmp.eq.s32.totalorder %v226, 1
    %vm240 = vcmp.eq.s32.totalorder %v230, 1
    %vm241 = vcmp.eq.s32.totalorder %v234, 1
    %vm242 = vcmp.eq.s32.totalorder %v238, 1
    %vm243 = vmpackc.low %vm240, %vm239
    %vm244 = vmpackc.low %vm242, %vm241
    %v245 = vsel %vm243, 65537, 0
    %v246 = vsel %vm244, 65537, 0
    %v247 = vlaneseq
    %v248 = vshrl.u32 %v247, 7
    %v249 = vsub.s32 0, %v248
    %v250 = vrot.slane %v245, %v249
    %v251 = vlaneseq
    %v252 = vshrl.u32 %v251, 7
    %v253 = vsub.s32 4, %v252
    %v254 = vrot.slane %v245, %v253
    %v255 = vlaneseq
    %v256 = vshrl.u32 %v255, 7
    %v257 = vsub.s32 0, %v256
    %v258 = vrot.slane %v246, %v257
    %v259 = vlaneseq
    %v260 = vshrl.u32 %v259, 7
    %v261 = vsub.s32 4, %v260
    %v262 = vrot.slane %v246, %v261
    %vm263 = vcmp.ne.s16.totalorder %v250, 0
    %vm264 = vcmp.ne.s16.totalorder %v254, 0
    %vm265 = vcmp.ne.s16.totalorder %v258, 0
    %vm266 = vcmp.ne.s16.totalorder %v262, 0
    %v267 = vsel %vm263, %v215, 0
    %v268 = vsel %vm264, %v207, 0
    %v269 = vsel %vm265, %v208, 0
    %v270 = vsel %vm266, %v209, 0
    %271 = vrot.lane.b32.xlu0 %v38, 1
    %v272 = vpop.permute.xlu0 %271
    %273 = vrot.lane.b32.xlu0 %v39, 1
    %v274 = vpop.permute.xlu0 %273
    %275 = vrot.lane.b32.xlu0 %v40, 1
    %v276 = vpop.permute.xlu0 %275
    %277 = vrot.lane.b32.xlu0 %v41, 1
    %v278 = vpop.permute.xlu0 %277
    %vm279 = vcmask 7168
    %v280 = vsel %vm279, %v272, %v274
    %v281 = vsel %vm279, %v274, %v276
    %v282 = vsel %vm279, %v276, %v278
    %vm286 = vcmask 7168
    %v288 = vsel %vm286, 0, %v272
    %vm290 = vcmp.ge.s32.totalorder %v42, 0
    %vm291 = vcmp.lt.s32.totalorder %v42, 16
    %vm292 = vmand %vm290, %vm291
    %vm293 = vmand %vm292, %vm73
    %vm294 = vmand %vm293, %vm75
    %v295 = vsel %vm294, 1, 0
    %v296 = vlaneseq
    %v297 = vshrl.u32 %v296, 7
    %v298 = vsub.s32 0, %v297
    %v299 = vrot.slane %v295, %v298
    %v300 = vlaneseq
    %v301 = vshrl.u32 %v300, 7
    %v302 = vsub.s32 1, %v301
    %v303 = vrot.slane %v295, %v302
    %v304 = vlaneseq
    %v305 = vshrl.u32 %v304, 7
    %v306 = vsub.s32 2, %v305
    %v307 = vrot.slane %v295, %v306
    %v308 = vlaneseq
    %v309 = vshrl.u32 %v308, 7
    %v310 = vsub.s32 3, %v309
    %v311 = vrot.slane %v295, %v310
    %vm312 = vcmp.eq.s32.totalorder %v299, 1
    %vm313 = vcmp.eq.s32.totalorder %v303, 1
    %vm314 = vcmp.eq.s32.totalorder %v307, 1
    %vm315 = vcmp.eq.s32.totalorder %v311, 1
    %vm316 = vmpackc.low %vm313, %vm312
    %vm317 = vmpackc.low %vm315, %vm314
    %v318 = vsel %vm316, 65537, 0
    %v319 = vsel %vm317, 65537, 0
    %v320 = vlaneseq
    %v321 = vshrl.u32 %v320, 7
    %v322 = vsub.s32 0, %v321
    %v323 = vrot.slane %v318, %v322
    %v324 = vlaneseq
    %v325 = vshrl.u32 %v324, 7
    %v326 = vsub.s32 4, %v325
    %v327 = vrot.slane %v318, %v326
    %v328 = vlaneseq
    %v329 = vshrl.u32 %v328, 7
    %v330 = vsub.s32 0, %v329
    %v331 = vrot.slane %v319, %v330
    %v332 = vlaneseq
    %v333 = vshrl.u32 %v332, 7
    %v334 = vsub.s32 4, %v333
    %v335 = vrot.slane %v319, %v334
    %vm336 = vcmp.ne.s16.totalorder %v323, 0
    %vm337 = vcmp.ne.s16.totalorder %v327, 0
    %vm338 = vcmp.ne.s16.totalorder %v331, 0
    %vm339 = vcmp.ne.s16.totalorder %v335, 0
    %v340 = vsel %vm336, %v288, 0
    %v341 = vsel %vm337, %v280, 0
    %v342 = vsel %vm338, %v281, 0
    %v343 = vsel %vm339, %v282, 0
    %vm344 = vmand %vm292, %vm145
    %vm345 = vmand %vm344, %vm147
    %v346 = vsel %vm345, 1, 0
    %v347 = vlaneseq
    %v348 = vshrl.u32 %v347, 7
    %v349 = vsub.s32 0, %v348
    %v350 = vrot.slane %v346, %v349
    %v351 = vlaneseq
    %v352 = vshrl.u32 %v351, 7
    %v353 = vsub.s32 1, %v352
    %v354 = vrot.slane %v346, %v353
    %v355 = vlaneseq
    %v356 = vshrl.u32 %v355, 7
    %v357 = vsub.s32 2, %v356
    %v358 = vrot.slane %v346, %v357
    %v359 = vlaneseq
    %v360 = vshrl.u32 %v359, 7
    %v361 = vsub.s32 3, %v360
    %v362 = vrot.slane %v346, %v361
    %vm363 = vcmp.eq.s32.totalorder %v350, 1
    %vm364 = vcmp.eq.s32.totalorder %v354, 1
    %vm365 = vcmp.eq.s32.totalorder %v358, 1
    %vm366 = vcmp.eq.s32.totalorder %v362, 1
    %vm367 = vmpackc.low %vm364, %vm363
    %vm368 = vmpackc.low %vm366, %vm365
    %v369 = vsel %vm367, 65537, 0
    %v370 = vsel %vm368, 65537, 0
    %v371 = vlaneseq
    %v372 = vshrl.u32 %v371, 7
    %v373 = vsub.s32 0, %v372
    %v374 = vrot.slane %v369, %v373
    %v375 = vlaneseq
    %v376 = vshrl.u32 %v375, 7
    %v377 = vsub.s32 4, %v376
    %v378 = vrot.slane %v369, %v377
    %v379 = vlaneseq
    %v380 = vshrl.u32 %v379, 7
    %v381 = vsub.s32 0, %v380
    %v382 = vrot.slane %v370, %v381
    %v383 = vlaneseq
    %v384 = vshrl.u32 %v383, 7
    %v385 = vsub.s32 4, %v384
    %v386 = vrot.slane %v370, %v385
    %vm387 = vcmp.ne.s16.totalorder %v374, 0
    %vm388 = vcmp.ne.s16.totalorder %v378, 0
    %vm389 = vcmp.ne.s16.totalorder %v382, 0
    %vm390 = vcmp.ne.s16.totalorder %v386, 0
    %v391 = vsel %vm387, %v38, 0
    %v392 = vsel %vm388, %v39, 0
    %v393 = vsel %vm389, %v40, 0
    %v394 = vsel %vm390, %v41, 0
    %395 = vrot.lane.b32.xlu0 %v38, 127
    %v396 = vpop.permute.xlu0 %395
    %397 = vrot.lane.b32.xlu0 %v39, 127
    %v398 = vpop.permute.xlu0 %397
    %399 = vrot.lane.b32.xlu0 %v40, 127
    %v400 = vpop.permute.xlu0 %399
    %401 = vrot.lane.b32.xlu0 %v41, 127
    %v402 = vpop.permute.xlu0 %401
    %vm403 = vcmask 1039360
    %v404 = vsel %vm403, %v396, %v398
    %v405 = vsel %vm403, %v398, %v400
    %v406 = vsel %vm403, %v400, %v402
    %vm410 = vcmask 1039360
    %v412 = vsel %vm410, %v402, 0
    %vm414 = vmand %vm292, %vm218
    %vm415 = vmand %vm414, %vm220
    %v416 = vsel %vm415, 1, 0
    %v417 = vlaneseq
    %v418 = vshrl.u32 %v417, 7
    %v419 = vsub.s32 0, %v418
    %v420 = vrot.slane %v416, %v419
    %v421 = vlaneseq
    %v422 = vshrl.u32 %v421, 7
    %v423 = vsub.s32 1, %v422
    %v424 = vrot.slane %v416, %v423
    %v425 = vlaneseq
    %v426 = vshrl.u32 %v425, 7
    %v427 = vsub.s32 2, %v426
    %v428 = vrot.slane %v416, %v427
    %v429 = vlaneseq
    %v430 = vshrl.u32 %v429, 7
    %v431 = vsub.s32 3, %v430
    %v432 = vrot.slane %v416, %v431
    %vm433 = vcmp.eq.s32.totalorder %v420, 1
    %vm434 = vcmp.eq.s32.totalorder %v424, 1
    %vm435 = vcmp.eq.s32.totalorder %v428, 1
    %vm436 = vcmp.eq.s32.totalorder %v432, 1
    %vm437 = vmpackc.low %vm434, %vm433
    %vm438 = vmpackc.low %vm436, %vm435
    %v439 = vsel %vm437, 65537, 0
    %v440 = vsel %vm438, 65537, 0
    %v441 = vlaneseq
    %v442 = vshrl.u32 %v441, 7
    %v443 = vsub.s32 0, %v442
    %v444 = vrot.slane %v439, %v443
    %v445 = vlaneseq
    %v446 = vshrl.u32 %v445, 7
    %v447 = vsub.s32 4, %v446
    %v448 = vrot.slane %v439, %v447
    %v449 = vlaneseq
    %v450 = vshrl.u32 %v449, 7
    %v451 = vsub.s32 0, %v450
    %v452 = vrot.slane %v440, %v451
    %v453 = vlaneseq
    %v454 = vshrl.u32 %v453, 7
    %v455 = vsub.s32 4, %v454
    %v456 = vrot.slane %v440, %v455
    %vm457 = vcmp.ne.s16.totalorder %v444, 0
    %vm458 = vcmp.ne.s16.totalorder %v448, 0
    %vm459 = vcmp.ne.s16.totalorder %v452, 0
    %vm460 = vcmp.ne.s16.totalorder %v456, 0
    %v461 = vsel %vm457, %v404, 0
    %v462 = vsel %vm458, %v405, 0
    %v463 = vsel %vm459, %v406, 0
    %v464 = vsel %vm460, %v412, 0
    %465 = vrot.lane.b32.xlu0 %v38, 113
    %v466 = vpop.permute.xlu0 %465
    %467 = vrot.lane.b32.xlu0 %v39, 113
    %v468 = vpop.permute.xlu0 %467
    %469 = vrot.lane.b32.xlu0 %v40, 113
    %v470 = vpop.permute.xlu0 %469
    %471 = vrot.lane.b32.xlu0 %v41, 113
    %v472 = vpop.permute.xlu0 %471
    %vm473 = vcmask 924672
    %v474 = vsel %vm473, %v466, %v468
    %v475 = vsel %vm473, %v468, %v470
    %v476 = vsel %vm473, %v470, %v472
    %vm480 = vcmask 924672
    %v482 = vsel %vm480, %v472, 0
    %v484 = vadd.s32 %v42, 1
    %vm485 = vcmp.ge.s32.totalorder %v484, 0
    %vm486 = vcmp.lt.s32.totalorder %v484, 16
    %vm487 = vmand %vm485, %vm486
    %vm488 = vmand %vm487, %vm73
    %vm489 = vmand %vm488, %vm75
    %v490 = vsel %vm489, 1, 0
    %v491 = vlaneseq
    %v492 = vshrl.u32 %v491, 7
    %v493 = vsub.s32 0, %v492
    %v494 = vrot.slane %v490, %v493
    %v495 = vlaneseq
    %v496 = vshrl.u32 %v495, 7
    %v497 = vsub.s32 1, %v496
    %v498 = vrot.slane %v490, %v497
    %v499 = vlaneseq
    %v500 = vshrl.u32 %v499, 7
    %v501 = vsub.s32 2, %v500
    %v502 = vrot.slane %v490, %v501
    %v503 = vlaneseq
    %v504 = vshrl.u32 %v503, 7
    %v505 = vsub.s32 3, %v504
    %v506 = vrot.slane %v490, %v505
    %vm507 = vcmp.eq.s32.totalorder %v494, 1
    %vm508 = vcmp.eq.s32.totalorder %v498, 1
    %vm509 = vcmp.eq.s32.totalorder %v502, 1
    %vm510 = vcmp.eq.s32.totalorder %v506, 1
    %vm511 = vmpackc.low %vm508, %vm507
    %vm512 = vmpackc.low %vm510, %vm509
    %v513 = vsel %vm511, 65537, 0
    %v514 = vsel %vm512, 65537, 0
    %v515 = vlaneseq
    %v516 = vshrl.u32 %v515, 7
    %v517 = vsub.s32 0, %v516
    %v518 = vrot.slane %v513, %v517
    %v519 = vlaneseq
    %v520 = vshrl.u32 %v519, 7
    %v521 = vsub.s32 4, %v520
    %v522 = vrot.slane %v513, %v521
    %v523 = vlaneseq
    %v524 = vshrl.u32 %v523, 7
    %v525 = vsub.s32 0, %v524
    %v526 = vrot.slane %v514, %v525
    %v527 = vlaneseq
    %v528 = vshrl.u32 %v527, 7
    %v529 = vsub.s32 4, %v528
    %v530 = vrot.slane %v514, %v529
    %vm531 = vcmp.ne.s16.totalorder %v518, 0
    %vm532 = vcmp.ne.s16.totalorder %v522, 0
    %vm533 = vcmp.ne.s16.totalorder %v526, 0
    %vm534 = vcmp.ne.s16.totalorder %v530, 0
    %v535 = vsel %vm531, %v474, 0
    %v536 = vsel %vm532, %v475, 0
    %v537 = vsel %vm533, %v476, 0
    %v538 = vsel %vm534, %v482, 0
    %539 = vrot.lane.b32.xlu0 %v38, 112
    %v540 = vpop.permute.xlu0 %539
    %541 = vrot.lane.b32.xlu0 %v39, 112
    %v542 = vpop.permute.xlu0 %541
    %543 = vrot.lane.b32.xlu0 %v40, 112
    %v544 = vpop.permute.xlu0 %543
    %545 = vrot.lane.b32.xlu0 %v41, 112
    %v546 = vpop.permute.xlu0 %545
    %vm547 = vcmask 916480
    %v548 = vsel %vm547, %v540, %v542
    %v549 = vsel %vm547, %v542, %v544
    %v550 = vsel %vm547, %v544, %v546
    %vm554 = vcmask 916480
    %v556 = vsel %vm554, %v546, 0
    %vm558 = vmand %vm487, %vm145
    %vm559 = vmand %vm558, %vm147
    %v560 = vsel %vm559, 1, 0
    %v561 = vlaneseq
    %v562 = vshrl.u32 %v561, 7
    %v563 = vsub.s32 0, %v562
    %v564 = vrot.slane %v560, %v563
    %v565 = vlaneseq
    %v566 = vshrl.u32 %v565, 7
    %v567 = vsub.s32 1, %v566
    %v568 = vrot.slane %v560, %v567
    %v569 = vlaneseq
    %v570 = vshrl.u32 %v569, 7
    %v571 = vsub.s32 2, %v570
    %v572 = vrot.slane %v560, %v571
    %v573 = vlaneseq
    %v574 = vshrl.u32 %v573, 7
    %v575 = vsub.s32 3, %v574
    %v576 = vrot.slane %v560, %v575
    %vm577 = vcmp.eq.s32.totalorder %v564, 1
    %vm578 = vcmp.eq.s32.totalorder %v568, 1
    %vm579 = vcmp.eq.s32.totalorder %v572, 1
    %vm580 = vcmp.eq.s32.totalorder %v576, 1
    %vm581 = vmpackc.low %vm578, %vm577
    %vm582 = vmpackc.low %vm580, %vm579
    %v583 = vsel %vm581, 65537, 0
    %v584 = vsel %vm582, 65537, 0
    %v585 = vlaneseq
    %v586 = vshrl.u32 %v585, 7
    %v587 = vsub.s32 0, %v586
    %v588 = vrot.slane %v583, %v587
    %v589 = vlaneseq
    %v590 = vshrl.u32 %v589, 7
    %v591 = vsub.s32 4, %v590
    %v592 = vrot.slane %v583, %v591
    %v593 = vlaneseq
    %v594 = vshrl.u32 %v593, 7
    %v595 = vsub.s32 0, %v594
    %v596 = vrot.slane %v584, %v595
    %v597 = vlaneseq
    %v598 = vshrl.u32 %v597, 7
    %v599 = vsub.s32 4, %v598
    %v600 = vrot.slane %v584, %v599
    %vm601 = vcmp.ne.s16.totalorder %v588, 0
    %vm602 = vcmp.ne.s16.totalorder %v592, 0
    %vm603 = vcmp.ne.s16.totalorder %v596, 0
    %vm604 = vcmp.ne.s16.totalorder %v600, 0
    %v605 = vsel %vm601, %v548, 0
    %v606 = vsel %vm602, %v549, 0
    %v607 = vsel %vm603, %v550, 0
    %v608 = vsel %vm604, %v556, 0
    %609 = vrot.lane.b32.xlu0 %v38, 111
    %v610 = vpop.permute.xlu0 %609
    %611 = vrot.lane.b32.xlu0 %v39, 111
    %v612 = vpop.permute.xlu0 %611
    %613 = vrot.lane.b32.xlu0 %v40, 111
    %v614 = vpop.permute.xlu0 %613
    %615 = vrot.lane.b32.xlu0 %v41, 111
    %v616 = vpop.permute.xlu0 %615
    %vm617 = vcmask 908288
    %v618 = vsel %vm617, %v610, %v612
    %v619 = vsel %vm617, %v612, %v614
    %v620 = vsel %vm617, %v614, %v616
    %vm624 = vcmask 908288
    %v626 = vsel %vm624, %v616, 0
    %vm628 = vmand %vm487, %vm218
    %vm629 = vmand %vm628, %vm220
    %v630 = vsel %vm629, 1, 0
    %v631 = vlaneseq
    %v632 = vshrl.u32 %v631, 7
    %v633 = vsub.s32 0, %v632
    %v634 = vrot.slane %v630, %v633
    %v635 = vlaneseq
    %v636 = vshrl.u32 %v635, 7
    %v637 = vsub.s32 1, %v636
    %v638 = vrot.slane %v630, %v637
    %v639 = vlaneseq
    %v640 = vshrl.u32 %v639, 7
    %v641 = vsub.s32 2, %v640
    %v642 = vrot.slane %v630, %v641
    %v643 = vlaneseq
    %v644 = vshrl.u32 %v643, 7
    %v645 = vsub.s32 3, %v644
    %v646 = vrot.slane %v630, %v645
    %vm647 = vcmp.eq.s32.totalorder %v634, 1
    %vm648 = vcmp.eq.s32.totalorder %v638, 1
    %vm649 = vcmp.eq.s32.totalorder %v642, 1
    %vm650 = vcmp.eq.s32.totalorder %v646, 1
    %vm651 = vmpackc.low %vm648, %vm647
    %vm652 = vmpackc.low %vm650, %vm649
    %v653 = vsel %vm651, 65537, 0
    %v654 = vsel %vm652, 65537, 0
    %v655 = vlaneseq
    %v656 = vshrl.u32 %v655, 7
    %v657 = vsub.s32 0, %v656
    %v658 = vrot.slane %v653, %v657
    %v659 = vlaneseq
    %v660 = vshrl.u32 %v659, 7
    %v661 = vsub.s32 4, %v660
    %v662 = vrot.slane %v653, %v661
    %v663 = vlaneseq
    %v664 = vshrl.u32 %v663, 7
    %v665 = vsub.s32 0, %v664
    %v666 = vrot.slane %v654, %v665
    %v667 = vlaneseq
    %v668 = vshrl.u32 %v667, 7
    %v669 = vsub.s32 4, %v668
    %v670 = vrot.slane %v654, %v669
    %vm671 = vcmp.ne.s16.totalorder %v658, 0
    %vm672 = vcmp.ne.s16.totalorder %v662, 0
    %vm673 = vcmp.ne.s16.totalorder %v666, 0
    %vm674 = vcmp.ne.s16.totalorder %v670, 0
    %v675 = vsel %vm671, %v618, 0
    %v676 = vsel %vm672, %v619, 0
    %v677 = vsel %vm673, %v620, 0
    %v678 = vsel %vm674, %v626, 0
    %v680 = vshrl.u32 %v194, 16
    %v682 = vrot.slane %v680, 6
    %v683 = vshll.u32 %v194, 16
    %v685 = vrot.slane %v683, 7
    %v686 = vor.u32 %v682, %v685
    %v688 = vshrl.u32 %v195, 16
    %v690 = vrot.slane %v688, 6
    %v691 = vshll.u32 %v195, 16
    %v693 = vrot.slane %v691, 7
    %v694 = vor.u32 %v690, %v693
    %v696 = vshrl.u32 %v196, 16
    %v698 = vrot.slane %v696, 6
    %v699 = vshll.u32 %v196, 16
    %v701 = vrot.slane %v699, 7
    %v702 = vor.u32 %v698, %v701
    %v704 = vshrl.u32 %v197, 16
    %v706 = vrot.slane %v704, 6
    %v707 = vshll.u32 %v197, 16
    %v709 = vrot.slane %v707, 7
    %v710 = vor.u32 %v706, %v709
    %v719 = vrot.slane %v267, 5
    %v720 = vrot.slane %v268, 5
    %v721 = vrot.slane %v269, 5
    %v722 = vrot.slane %v270, 5
    %v724 = vshrl.u32 %v340, 16
    %v726 = vrot.slane %v724, 3
    %v727 = vshll.u32 %v340, 16
    %v729 = vrot.slane %v727, 4
    %v730 = vor.u32 %v726, %v729
    %v732 = vshrl.u32 %v341, 16
    %v734 = vrot.slane %v732, 3
    %v735 = vshll.u32 %v341, 16
    %v737 = vrot.slane %v735, 4
    %v738 = vor.u32 %v734, %v737
    %v740 = vshrl.u32 %v342, 16
    %v742 = vrot.slane %v740, 3
    %v743 = vshll.u32 %v342, 16
    %v745 = vrot.slane %v743, 4
    %v746 = vor.u32 %v742, %v745
    %v748 = vshrl.u32 %v343, 16
    %v750 = vrot.slane %v748, 3
    %v751 = vshll.u32 %v343, 16
    %v753 = vrot.slane %v751, 4
    %v754 = vor.u32 %v750, %v753
    %v763 = vrot.slane %v391, 2
    %v764 = vrot.slane %v392, 2
    %v765 = vrot.slane %v393, 2
    %v766 = vrot.slane %v394, 2
    %v768 = vshll.u32 %v461, 16
    %v770 = vrot.slane %v768, 1
    %v772 = vshll.u32 %v462, 16
    %v774 = vrot.slane %v772, 1
    %v776 = vshll.u32 %v463, 16
    %v778 = vrot.slane %v776, 1
    %v780 = vshll.u32 %v464, 16
    %v782 = vrot.slane %v780, 1
    %v783 = vshrl.u32 %v461, 16
    %v785 = vor.u32 %v783, %v770
    %v786 = vshrl.u32 %v462, 16
    %v788 = vor.u32 %v786, %v774
    %v789 = vshrl.u32 %v463, 16
    %v791 = vor.u32 %v789, %v778
    %v792 = vshrl.u32 %v464, 16
    %v794 = vor.u32 %v792, %v782
    %v803 = vrot.slane %v535, 7
    %v804 = vrot.slane %v536, 7
    %v805 = vrot.slane %v537, 7
    %v806 = vrot.slane %v538, 7
    %v808 = vshrl.u32 %v605, 16
    %v810 = vrot.slane %v808, 5
    %v811 = vshll.u32 %v605, 16
    %v813 = vrot.slane %v811, 6
    %v814 = vor.u32 %v810, %v813
    %v816 = vshrl.u32 %v606, 16
    %v818 = vrot.slane %v816, 5
    %v819 = vshll.u32 %v606, 16
    %v821 = vrot.slane %v819, 6
    %v822 = vor.u32 %v818, %v821
    %v824 = vshrl.u32 %v607, 16
    %v826 = vrot.slane %v824, 5
    %v827 = vshll.u32 %v607, 16
    %v829 = vrot.slane %v827, 6
    %v830 = vor.u32 %v826, %v829
    %v832 = vshrl.u32 %v608, 16
    %v834 = vrot.slane %v832, 5
    %v835 = vshll.u32 %v608, 16
    %v837 = vrot.slane %v835, 6
    %v838 = vor.u32 %v834, %v837
    %v847 = vrot.slane %v675, 4
    %v848 = vrot.slane %v676, 4
    %v849 = vrot.slane %v677, 4
    %v850 = vrot.slane %v678, 4
    %vm851 = vcmask 1041408
    %vm852 = vsmask.f32 1280
    %vm853 = vmand %vm851, %vm852
    %v854 = vsel %vm853, %v122, %v686
    %v855 = vsel %vm853, %v123, %v694
    %v856 = vsel %vm853, %v124, %v702
    %v857 = vsel %vm853, %v125, %v710
    %vm858 = vcmask 1042432
    %v861 = vsel %vm858, %v854, %v719
    %v865 = vsel %vm858, %v855, %v720
    %v869 = vsel %vm858, %v856, %v721
    %v873 = vsel %vm858, %v857, %v722
    %vm875 = vcmask 1044480
    %vm876 = vsmask.f32 4352
    %vm877 = vmand %vm875, %vm876
    %v878 = vsel %vm877, %v861, %v730
    %v879 = vsel %vm877, %v865, %v738
    %v880 = vsel %vm877, %v869, %v746
    %v881 = vsel %vm877, %v873, %v754
    %vm882 = vcmask 1045504
    %v885 = vsel %vm882, %v878, %v763
    %v889 = vsel %vm882, %v879, %v764
    %v893 = vsel %vm882, %v880, %v765
    %v897 = vsel %vm882, %v881, %v766
    %vm899 = vcmask 1047552
    %vm900 = vsmask.f32 7424
    %vm901 = vmand %vm899, %vm900
    %v902 = vsel %vm901, %v885, %v770
    %v903 = vsel %vm901, %v889, %v774
    %v904 = vsel %vm901, %v893, %v778
    %v905 = vsel %vm901, %v897, %v782
    %vm906 = vcmask 1040384
    %v909 = vsel %vm906, %v785, %v803
    %v913 = vsel %vm906, %v788, %v804
    %v917 = vsel %vm906, %v791, %v805
    %v921 = vsel %vm906, %v794, %v806
    %vm923 = vcmask 1042432
    %vm924 = vsmask.f32 2304
    %vm925 = vmand %vm923, %vm924
    %v926 = vsel %vm925, %v909, %v814
    %v927 = vsel %vm925, %v913, %v822
    %v928 = vsel %vm925, %v917, %v830
    %v929 = vsel %vm925, %v921, %v838
    %vm930 = vcmask 1043456
    %v933 = vsel %vm930, %v926, %v847
    %v936 = vsel %vm930, %v927, %v848
    %v939 = vsel %vm930, %v928, %v849
    %v942 = vsel %vm930, %v929, %v850
    %v943 = vld [vmem:[%s3] sm:$0xf]
    %v944 = vld [vmem:[%s4] sm:$0xff]
    %946 = vset.pattern.permute.xlu0 0
    %947 = vperm.xlu0 %946, %v944
    %v948 = vpop.permute.xlu0 %947
    %vm950 = vcmask 220160
    %v952 = vsel %vm950, %v943, 0
    %vm954 = vcmask 1044480
    %v955 = vsel %vm954, 4294967295, 65535
    %v956 = vsel %vm882, %v955, 0
    %v957 = vand.u32 %v933, %v956
    %v959 = vand.u32 %v936, %v956
    %v961 = vand.u32 %v939, %v956
    %v963 = vand.u32 %v942, %v956
    %965 = vmatprep.subr.bf16.mxu0 0
    %966 = vmatpush1.bf16.msra.mxu0 0
    %967 = vmatprep.subr.bf16.mxu0 0
    %968 = vmatpush1.bf16.msra.mxu0 0
    %969 = vmatprep.subr.bf16.mxu0 0
    %970 = vmatpush1.bf16.msra.mxu0 0
    %971 = vmatprep.subr.bf16.mxu0 0
    %972 = vmatpush1.bf16.msra.mxu0 0
    %973 = vmatprep.subr.bf16.mxu0 0
    %974 = vmatpush1.bf16.msra.mxu0 0
    %975 = vmatprep.subr.bf16.mxu0 0
    %976 = vmatpush1.bf16.msra.mxu0 0
    %977 = vmatprep.subr.bf16.mxu0 %v959
    %978 = vmatpush1.bf16.msra.mxu0 %v957
    %979 = vmatprep.subr.bf16.mxu0 %v903
    %980 = vmatpush1.bf16.msra.mxu0 %v902
    %981 = vmatprep.subr.bf16.mxu0 0
    %982 = vmatpush2.bf16.msra.mxu0 0
    %983 = vmatprep.subr.bf16.mxu0 0
    %984 = vmatpush2.bf16.msra.mxu0 0
    %985 = vmatprep.subr.bf16.mxu0 0
    %986 = vmatpush2.bf16.msra.mxu0 0
    %987 = vmatprep.subr.bf16.mxu0 0
    %988 = vmatpush2.bf16.msra.mxu0 0
    %989 = vmatprep.subr.bf16.mxu0 0
    %990 = vmatpush2.bf16.msra.mxu0 0
    %991 = vmatprep.subr.bf16.mxu0 0
    %992 = vmatpush2.bf16.msra.mxu0 0
    %993 = vmatprep.subr.bf16.mxu0 0
    %994 = vmatpush2.bf16.msra.mxu0 0
    %995 = vmatprep.subr.bf16.mxu0 0
    %996 = vmatpush2.bf16.msra.mxu0 0
    %997 = vmatprep.mubr.bf16.mxu0 0
    %998 = vmatmul.mubr.bf16.gmra.mxu0 %v952
    %v999 = vpop.f32.mrf.mxu0
    %v1000 = vadd.f32 %v948, %v999
    %v1001 = vpop.f32.mrf.mxu0
    %v1002 = vadd.f32 %v948, %v1001
    %v1003 = vpop.f32.mrf.mxu0
    %v1004 = vpop.f32.mrf.mxu0
    %1005 = vdwg.mxu0
    %1006 = vmatprep.subr.bf16.mxu0 0
    %1007 = vmatpush1.bf16.msra.mxu0 0
    %1008 = vmatprep.subr.bf16.mxu0 0
    %1009 = vmatpush1.bf16.msra.mxu0 0
    %1010 = vmatprep.subr.bf16.mxu0 0
    %1011 = vmatpush1.bf16.msra.mxu0 0
    %1012 = vmatprep.subr.bf16.mxu0 0
    %1013 = vmatpush1.bf16.msra.mxu0 0
    %1014 = vmatprep.subr.bf16.mxu0 0
    %1015 = vmatpush1.bf16.msra.mxu0 0
    %1016 = vmatprep.subr.bf16.mxu0 0
    %1017 = vmatpush1.bf16.msra.mxu0 0
    %1018 = vmatprep.subr.bf16.mxu0 %v963
    %1019 = vmatpush1.bf16.msra.mxu0 %v961
    %1020 = vmatprep.subr.bf16.mxu0 %v905
    %1021 = vmatpush1.bf16.msra.mxu0 %v904
    %1022 = vmatprep.subr.bf16.mxu0 0
    %1023 = vmatpush2.bf16.msra.mxu0 0
    %1024 = vmatprep.subr.bf16.mxu0 0
    %1025 = vmatpush2.bf16.msra.mxu0 0
    %1026 = vmatprep.subr.bf16.mxu0 0
    %1027 = vmatpush2.bf16.msra.mxu0 0
    %1028 = vmatprep.subr.bf16.mxu0 0
    %1029 = vmatpush2.bf16.msra.mxu0 0
    %1030 = vmatprep.subr.bf16.mxu0 0
    %1031 = vmatpush2.bf16.msra.mxu0 0
    %1032 = vmatprep.subr.bf16.mxu0 0
    %1033 = vmatpush2.bf16.msra.mxu0 0
    %1034 = vmatprep.subr.bf16.mxu0 0
    %1035 = vmatpush2.bf16.msra.mxu0 0
    %1036 = vmatprep.subr.bf16.mxu0 0
    %1037 = vmatpush2.bf16.msra.mxu0 0
    %1038 = vmatprep.mubr.bf16.mxu0 0
    %1039 = vmatmul.mubr.bf16.gmra.mxu0 %v952
    %v1040 = vpop.f32.mrf.mxu0
    %v1041 = vadd.f32 %v948, %v1040
    %v1042 = vpop.f32.mrf.mxu0
    %v1043 = vadd.f32 %v948, %v1042
    %v1044 = vpop.f32.mrf.mxu0
    %v1045 = vpop.f32.mrf.mxu0
    %1046 = vdwg.mxu0
    %1047 = vst [vmem:[#allocation2] sm:$0xff] %v1000
    %1048 = vst [vmem:[#allocation2 + $0x8] sm:$0xff] %v1002
    %1049 = vst [vmem:[#allocation2 + $0x10] sm:$0xff] %v1041
    %1050 = vst [vmem:[#allocation2 + $0x18] sm:$0xff] %v1043
    // Predicated region
    $region30: #{tpu_custom_call.1} parent=1 // pred_check
      _
    $region31: #{tpu_custom_call.1} parent=1 // pred_check_branch
      %1052 = sbr.rel (0) target = $region33
    $region32: #{tpu_custom_call.1} parent=1 // pred_region
      %s1054 = ssub.s32 512, 512
      %1055 = vsyncadd [#allocation3], %s1054
      %s1057 = sshll.u32 [#allocation2], 4
      %s1058 = int_to_ptr.vmem [resolvable:$true] %s1057
      %1060 = dma.vmem_to_hbm [thread:$0]  %s1058, 512, %s7, [#allocation3]
    $region33: #{tpu_custom_call.1} parent=1 // pred_fallthru
      _
    // Predicated region
    $region34: #{tpu_custom_call.1} parent=1 // pred_check
      _
    $region35: #{tpu_custom_call.1} parent=1 // pred_check_branch
      %1062 = sbr.rel (0) target = $region37
    $region36: #{tpu_custom_call.1} parent=1 // pred_region
      %1063 = dma.done [#allocation3], 512
    $region37: #{tpu_custom_call.1} parent=1 // pred_fallthru
      _
    %1064 = vsyncpa [#allocation3], 1

</llo_original>
